<compile_context>
chip_gen: v7x
topology: tpu7x:2x2x1
jax: 0.10.0
libtpu: 0.0.40
codegen_flags: <defaults>
</compile_context>

<pallas_src>
import jax
import jax.numpy as jnp
from jax.experimental import pallas as pl
from jax.experimental.pallas import tpu as pltpu


def _round_up(x, m):
    return ((x + m - 1) // m) * m


def _pick_tb(B, block_b):
    """Batch-tile rows.

    Small B: one tile, multiple of 8 (sublane alignment).
    Large B: multiple of 256 (MXU M-fill on v6e/v7x; also a multiple of 128 for v5e),
    capped so the grid has >= 2 steps and v7x's two TensorCores both get work.
    """
    b8 = _round_up(B, 8)
    if b8 <= 256:
        return b8
    block_b = max(256, _round_up(block_b, 256))
    return min(block_b, _round_up(pl.cdiv(b8, 2), 256))


def _mlp_kernel(x_ref, w1_ref, b1_ref, w2_ref, b2_ref, o_ref):
    # Cast activations to bf16 inside VMEM (no extra wrapper-side HBM pass over x).
    x_bf = x_ref[...].astype(jnp.bfloat16)

    # Layer 1 on the MXU: bf16 operands, f32 accumulation.
    h = jnp.dot(x_bf, w1_ref[...], preferred_element_type=jnp.float32)
    h = jnp.maximum(h + b1_ref[...], 0.0)          # bias + ReLU in f32 (VPU)

    # Layer 2: hidden activation never leaves VMEM (fusion win); bf16 MXU, f32 accum.
    y = jnp.dot(h.astype(jnp.bfloat16), w2_ref[...],
                preferred_element_type=jnp.float32)
    y = y + b2_ref[...]

    # sigmoid(y) = 0.5 * tanh(0.5 * y) + 0.5 : a single EUP push, no overflow path.
    o_ref[...] = (0.5 * jnp.tanh(0.5 * y) + 0.5).astype(o_ref.dtype)


def net_forward(x, w1, b1, w2, b2, *, block_b=1024, vmem_limit_bytes=None,
                out_dtype=jnp.bfloat16):
    """Fused Linear -> ReLU -> Linear -> Sigmoid.

    x:  (B, in_dim)            float32 (cast to bf16 inside the kernel)
    w1: (in_dim, hidden_dim)   float32 (already transposed vs. PyTorch)
    b1: (1, hidden_dim)        float32
    w2: (hidden_dim, out_dim)  float32
    b2: (1, out_dim)           float32
    returns: (B, out_dim)      bf16 (logistic head; ~1e-2-level error vs f32 ref)
    """
    B, in_dim = x.shape
    in_w1, hidden = w1.shape
    hid_w2, out_dim = w2.shape
    assert in_w1 == in_dim and hid_w2 == hidden

    tb = _pick_tb(B, block_b)
    grid = (pl.cdiv(B, tb),)

    # Weights: tiny one-time bf16 casts. Biases stay f32 for the f32 epilogue (v5e-safe).
    w1_bf = w1.astype(jnp.bfloat16)
    w2_bf = w2.astype(jnp.bfloat16)
    b1_f = b1.reshape(1, hidden).astype(jnp.float32)
    b2_f = b2.reshape(1, out_dim).astype(jnp.float32)

    # ---- VMEM budget from actual (lane/sublane padded) tile footprints -------------
    def _tile_bytes(rows, cols, itemsize):
        return _round_up(rows, 8) * _round_up(cols, 128) * itemsize

    vmem_need = (
        2 * _tile_bytes(tb, in_dim, 4)          # x tiles, f32, double-buffered
        + 2 * _tile_bytes(tb, out_dim, 2)       # out tiles, bf16, double-buffered
        + 2 * (_tile_bytes(in_dim, hidden, 2)   # weights (worst case: 2 buffers)
               + _tile_bytes(hidden, out_dim, 2))
        + 2 * (_tile_bytes(1, hidden, 4) + _tile_bytes(1, out_dim, 4))   # biases
        + _tile_bytes(tb, hidden, 4) + _tile_bytes(tb, out_dim, 4)       # h / y live values
    )
    if vmem_limit_bytes is None:
        vmem_limit_bytes = min(96 << 20,
                               max(32 << 20, int(1.5 * vmem_need) + (8 << 20)))

    # ---- honest cost estimate (real HBM bytes, real emitted transcendentals) -------
    rows_computed = grid[0] * tb
    cost = pl.CostEstimate(
        flops=int(2 * rows_computed * (in_dim * hidden + hidden * out_dim)),
        transcendentals=int(rows_computed * out_dim),          # one tanh per element
        bytes_accessed=int(
            x.size * x.dtype.itemsize                          # x read as-is (f32)
            + w1_bf.size * 2 + w2_bf.size * 2                  # bf16 weights
            + b1_f.size * 4 + b2_f.size * 4                    # f32 biases
            + B * out_dim * jnp.dtype(out_dtype).itemsize      # bf16, unpadded output
        ),
    )

    def _resident(shape, single_buffer):
        kwargs = {}
        if single_buffer:
            kwargs["pipeline_mode"] = pl.Buffered(1)   # weights are grid-invariant
        return pl.BlockSpec(shape, lambda i: (0, 0), **kwargs)

    def _build(single_buffer_weights):
        return pl.pallas_call(
            _mlp_kernel,
            out_shape=jax.ShapeDtypeStruct((B, out_dim), out_dtype),
            grid_spec=pltpu.PrefetchScalarGridSpec(
                num_scalar_prefetch=0,
                grid=grid,
                in_specs=[
                    pl.BlockSpec((tb, in_dim), lambda i: (i, 0)),          # x: batch-tiled
                    _resident((in_dim, hidden), single_buffer_weights),    # w1: resident
                    _resident((1, hidden), single_buffer_weights),         # b1: resident
                    _resident((hidden, out_dim), single_buffer_weights),   # w2: resident
                    _resident((1, out_dim), single_buffer_weights),        # b2: resident
                ],
                out_specs=pl.BlockSpec((tb, out_dim), lambda i: (i, 0)),   # unpadded out
            ),
            compiler_params=pltpu.CompilerParams(
                dimension_semantics=("parallel",),     # megacore split on v7x
                vmem_limit_bytes=vmem_limit_bytes,
            ),
            cost_estimate=cost,
        )

    try:
        return _build(hasattr(pl, "Buffered"))(x, w1_bf, b1_f, w2_bf, b2_f)
    except Exception:
        # TODO(synk): pl.Buffered(1) (single-buffered resident weights) rejected by this
        # jax/Mosaic version; fall back to default double-buffering.
        return _build(False)(x, w1_bf, b1_f, w2_bf, b2_f)


def init_params(key, in_dim, hidden_dim, out_dim):
    """Deterministic init mimicking nn.Linear's uniform(-1/sqrt(fan_in), +)."""
    k1, k2, k3, k4 = jax.random.split(key, 4)
    bound1 = 1.0 / jnp.sqrt(in_dim)
    bound2 = 1.0 / jnp.sqrt(hidden_dim)
    # Stored already transposed to (in_features, out_features).
    w1 = jax.random.uniform(k1, (in_dim, hidden_dim), jnp.float32, -bound1, bound1)
    b1 = jax.random.uniform(k2, (1, hidden_dim), jnp.float32, -bound1, bound1)
    w2 = jax.random.uniform(k3, (hidden_dim, out_dim), jnp.float32, -bound2, bound2)
    b2 = jax.random.uniform(k4, (1, out_dim), jnp.float32, -bound2, bound2)
    return w1, b1, w2, b2


if __name__ == "__main__":
    # TODO(synk): nn.Dropout(0.5) is declared in __init__ but never used in forward(); not applied.
    in_dim, hidden_dim, out_dim = 32, 64, 8
    batch = 8

    key = jax.random.PRNGKey(0)
    k_x, k_p = jax.random.split(key)
    x = jax.random.normal(k_x, (batch, in_dim), jnp.float32)
    w1, b1, w2, b2 = init_params(k_p, in_dim, hidden_dim, out_dim)

    out = net_forward(x, w1, b1, w2, b2)
    out = jax.block_until_ready(out)

    assert out.shape == (batch, out_dim)
    assert out.dtype == jnp.bfloat16

    # Reference in plain f32 JAX. Kernel uses bf16 matmul operands + bf16 output,
    # so ~1e-2-level differences are expected; the 2e-2 atol is load-bearing.
    ref = jax.nn.sigmoid(jnp.maximum(x @ w1 + b1, 0.0) @ w2 + b2)
    assert jnp.allclose(out.astype(jnp.float32), ref, atol=2e-2), "mismatch vs reference"

    print("KERNEL_OK")
</pallas_src>

<mosaic_0001>
module attributes {stable_mosaic.version = 11 : i64} {
  func.func @_mlp_kernel(%arg0: i32, %arg1: memref<8x32xf32, #tpu.memory_space<vmem>>, %arg2: memref<32x64xbf16, #tpu.memory_space<vmem>>, %arg3: memref<1x64xf32, #tpu.memory_space<vmem>>, %arg4: memref<64x8xbf16, #tpu.memory_space<vmem>>, %arg5: memref<1x8xf32, #tpu.memory_space<vmem>>, %arg6: memref<8x8xbf16, #tpu.memory_space<vmem>>) attributes {dimension_semantics = [#tpu.dimension_semantics<parallel>], iteration_bounds = array<i64: 1>, scalar_prefetch = 0 : i64, scratch_operands = 0 : i64, tpu.core_type = #tpu.core_type<tc>, window_params = [{transform_indices = @transform_0, window_bounds = array<i64: 8, 32>}, {pipeline_mode = #tpu.pipeline_mode<synchronous>, transform_indices = @transform_1, window_bounds = array<i64: 32, 64>}, {pipeline_mode = #tpu.pipeline_mode<synchronous>, transform_indices = @transform_2, window_bounds = array<i64: 1, 64>}, {pipeline_mode = #tpu.pipeline_mode<synchronous>, transform_indices = @transform_3, window_bounds = array<i64: 64, 8>}, {pipeline_mode = #tpu.pipeline_mode<synchronous>, transform_indices = @transform_4, window_bounds = array<i64: 1, 8>}, {transform_indices = @transform_5, window_bounds = array<i64: 8, 8>}]} {
    %c0 = arith.constant 0 : index
    %c0_0 = arith.constant 0 : index
    %0 = vector.load %arg1[%c0, %c0_0] : memref<8x32xf32, #tpu.memory_space<vmem>>, vector<8x32xf32>
    %1 = arith.truncf %0 : vector<8x32xf32> to vector<8x32xbf16>
    %c0_1 = arith.constant 0 : index
    %c0_2 = arith.constant 0 : index
    %2 = vector.load %arg2[%c0_1, %c0_2] : memref<32x64xbf16, #tpu.memory_space<vmem>>, vector<32x64xbf16>
    %cst = arith.constant dense<0.000000e+00> : vector<8x64xf32>
    %3 = tpu.matmul %1, %2, %cst {dimension_numbers = #tpu.dot_dimension_numbers<[1], [0], [0], [1], [0, 0, 1, 1], [], []>} : vector<8x32xbf16>, vector<32x64xbf16>, vector<8x64xf32> -> vector<8x64xf32>
    %c0_3 = arith.constant 0 : index
    %c0_4 = arith.constant 0 : index
    %4 = vector.load %arg3[%c0_3, %c0_4] : memref<1x64xf32, #tpu.memory_space<vmem>>, vector<1x64xf32>
    %5 = vector.broadcast %4 : vector<1x64xf32> to vector<8x64xf32>
    %6 = arith.addf %3, %5 : vector<8x64xf32>
    %cst_5 = arith.constant 0.000000e+00 : f32
    %7 = vector.broadcast %cst_5 : f32 to vector<8x64xf32>
    %8 = arith.maximumf %6, %7 : vector<8x64xf32>
    %9 = arith.truncf %8 : vector<8x64xf32> to vector<8x64xbf16>
    %c0_6 = arith.constant 0 : index
    %c0_7 = arith.constant 0 : index
    %10 = vector.load %arg4[%c0_6, %c0_7] : memref<64x8xbf16, #tpu.memory_space<vmem>>, vector<64x8xbf16>
    %cst_8 = arith.constant dense<0.000000e+00> : vector<8x8xf32>
    %11 = tpu.matmul %9, %10, %cst_8 {dimension_numbers = #tpu.dot_dimension_numbers<[1], [0], [0], [1], [0, 0, 1, 1], [], []>} : vector<8x64xbf16>, vector<64x8xbf16>, vector<8x8xf32> -> vector<8x8xf32>
    %c0_9 = arith.constant 0 : index
    %c0_10 = arith.constant 0 : index
    %12 = vector.load %arg5[%c0_9, %c0_10] : memref<1x8xf32, #tpu.memory_space<vmem>>, vector<1x8xf32>
    %13 = vector.broadcast %12 : vector<1x8xf32> to vector<8x8xf32>
    %14 = arith.addf %11, %13 : vector<8x8xf32>
    %cst_11 = arith.constant 5.000000e-01 : f32
    %15 = vector.broadcast %cst_11 : f32 to vector<8x8xf32>
    %16 = arith.mulf %15, %14 : vector<8x8xf32>
    %17 = math.tanh %16 : vector<8x8xf32>
    %cst_12 = arith.constant 5.000000e-01 : f32
    %18 = vector.broadcast %cst_12 : f32 to vector<8x8xf32>
    %19 = arith.mulf %18, %17 : vector<8x8xf32>
    %cst_13 = arith.constant 5.000000e-01 : f32
    %20 = vector.broadcast %cst_13 : f32 to vector<8x8xf32>
    %21 = arith.addf %19, %20 : vector<8x8xf32>
    %22 = arith.truncf %21 : vector<8x8xf32> to vector<8x8xbf16>
    %c0_14 = arith.constant 0 : index
    %c0_15 = arith.constant 0 : index
    %23 = vector.load %arg6[%c0_14, %c0_15] : memref<8x8xbf16, #tpu.memory_space<vmem>>, vector<8x8xbf16>
    tpu.vector_store %arg6[%c0_14, %c0_15], %22 {strides = array<i32>} : memref<8x8xbf16, #tpu.memory_space<vmem>>, vector<8x8xbf16>,
    return
  }
  func.func @transform_0(%arg0: i32) -> (i32, i32) {
    %c0_i32 = arith.constant 0 : i32
    %c0_i32_0 = arith.constant 0 : i32
    return %arg0, %c0_i32 : i32, i32
  }
  func.func @transform_1(%arg0: i32) -> (i32, i32) {
    %c0_i32 = arith.constant 0 : i32
    %c0_i32_0 = arith.constant 0 : i32
    %c0_i32_1 = arith.constant 0 : i32
    return %c0_i32, %c0_i32_0 : i32, i32
  }
  func.func @transform_2(%arg0: i32) -> (i32, i32) {
    %c0_i32 = arith.constant 0 : i32
    %c0_i32_0 = arith.constant 0 : i32
    %c0_i32_1 = arith.constant 0 : i32
    return %c0_i32, %c0_i32_0 : i32, i32
  }
  func.func @transform_3(%arg0: i32) -> (i32, i32) {
    %c0_i32 = arith.constant 0 : i32
    %c0_i32_0 = arith.constant 0 : i32
    %c0_i32_1 = arith.constant 0 : i32
    return %c0_i32, %c0_i32_0 : i32, i32
  }
  func.func @transform_4(%arg0: i32) -> (i32, i32) {
    %c0_i32 = arith.constant 0 : i32
    %c0_i32_0 = arith.constant 0 : i32
    %c0_i32_1 = arith.constant 0 : i32
    return %c0_i32, %c0_i32_0 : i32, i32
  }
  func.func @transform_5(%arg0: i32) -> (i32, i32) {
    %c0_i32 = arith.constant 0 : i32
    %c0_i32_0 = arith.constant 0 : i32
    return %arg0, %c0_i32 : i32, i32
  }
}

module attributes {stable_mosaic.version = 11 : i64} {
  func.func @_mlp_kernel(%arg0: i32, %arg1: memref<8x32xf32, #tpu.memory_space<vmem>>, %arg2: memref<32x64xbf16, #tpu.memory_space<vmem>>, %arg3: memref<1x64xf32, #tpu.memory_space<vmem>>, %arg4: memref<64x8xbf16, #tpu.memory_space<vmem>>, %arg5: memref<1x8xf32, #tpu.memory_space<vmem>>, %arg6: memref<8x8xbf16, #tpu.memory_space<vmem>>) attributes {dimension_semantics = [#tpu.dimension_semantics<parallel>], iteration_bounds = array<i64: 1>, scalar_prefetch = 0 : i64, scratch_operands = 0 : i64, tpu.core_type = #tpu.core_type<tc>, window_params = [{transform_indices = @transform_0, window_bounds = array<i64: 8, 32>}, {pipeline_mode = #tpu.pipeline_mode<synchronous>, transform_indices = @transform_1, window_bounds = array<i64: 32, 64>}, {pipeline_mode = #tpu.pipeline_mode<synchronous>, transform_indices = @transform_2, window_bounds = array<i64: 1, 64>}, {pipeline_mode = #tpu.pipeline_mode<synchronous>, transform_indices = @transform_3, window_bounds = array<i64: 64, 8>}, {pipeline_mode = #tpu.pipeline_mode<synchronous>, transform_indices = @transform_4, window_bounds = array<i64: 1, 8>}, {transform_indices = @transform_5, window_bounds = array<i64: 8, 8>}]} {
    %c0 = arith.constant 0 : index
    %c0_0 = arith.constant 0 : index
    %0 = vector.load %arg1[%c0, %c0_0] : memref<8x32xf32, #tpu.memory_space<vmem>>, vector<8x32xf32>
    %1 = arith.truncf %0 : vector<8x32xf32> to vector<8x32xbf16>
    %c0_1 = arith.constant 0 : index
    %c0_2 = arith.constant 0 : index
    %2 = vector.load %arg2[%c0_1, %c0_2] : memref<32x64xbf16, #tpu.memory_space<vmem>>, vector<32x64xbf16>
    %cst = arith.constant dense<0.000000e+00> : vector<8x64xf32>
    %3 = tpu.matmul %1, %2, %cst {dimension_numbers = #tpu.dot_dimension_numbers<[1], [0], [0], [1], [0, 0, 1, 1], [], []>} : vector<8x32xbf16>, vector<32x64xbf16>, vector<8x64xf32> -> vector<8x64xf32>
    %c0_3 = arith.constant 0 : index
    %c0_4 = arith.constant 0 : index
    %4 = vector.load %arg3[%c0_3, %c0_4] : memref<1x64xf32, #tpu.memory_space<vmem>>, vector<1x64xf32>
    %5 = vector.broadcast %4 : vector<1x64xf32> to vector<8x64xf32>
    %6 = arith.addf %3, %5 : vector<8x64xf32>
    %cst_5 = arith.constant 0.000000e+00 : f32
    %7 = vector.broadcast %cst_5 : f32 to vector<8x64xf32>
    %8 = arith.maximumf %6, %7 : vector<8x64xf32>
    %9 = arith.truncf %8 : vector<8x64xf32> to vector<8x64xbf16>
    %c0_6 = arith.constant 0 : index
    %c0_7 = arith.constant 0 : index
    %10 = vector.load %arg4[%c0_6, %c0_7] : memref<64x8xbf16, #tpu.memory_space<vmem>>, vector<64x8xbf16>
    %cst_8 = arith.constant dense<0.000000e+00> : vector<8x8xf32>
    %11 = tpu.matmul %9, %10, %cst_8 {dimension_numbers = #tpu.dot_dimension_numbers<[1], [0], [0], [1], [0, 0, 1, 1], [], []>} : vector<8x64xbf16>, vector<64x8xbf16>, vector<8x8xf32> -> vector<8x8xf32>
    %c0_9 = arith.constant 0 : index
    %c0_10 = arith.constant 0 : index
    %12 = vector.load %arg5[%c0_9, %c0_10] : memref<1x8xf32, #tpu.memory_space<vmem>>, vector<1x8xf32>
    %13 = vector.broadcast %12 : vector<1x8xf32> to vector<8x8xf32>
    %14 = arith.addf %11, %13 : vector<8x8xf32>
    %cst_11 = arith.constant 5.000000e-01 : f32
    %15 = vector.broadcast %cst_11 : f32 to vector<8x8xf32>
    %16 = arith.mulf %15, %14 : vector<8x8xf32>
    %17 = math.tanh %16 : vector<8x8xf32>
    %cst_12 = arith.constant 5.000000e-01 : f32
    %18 = vector.broadcast %cst_12 : f32 to vector<8x8xf32>
    %19 = arith.mulf %18, %17 : vector<8x8xf32>
    %cst_13 = arith.constant 5.000000e-01 : f32
    %20 = vector.broadcast %cst_13 : f32 to vector<8x8xf32>
    %21 = arith.addf %19, %20 : vector<8x8xf32>
    %22 = arith.truncf %21 : vector<8x8xf32> to vector<8x8xbf16>
    %c0_14 = arith.constant 0 : index
    %c0_15 = arith.constant 0 : index
    %23 = vector.load %arg6[%c0_14, %c0_15] : memref<8x8xbf16, #tpu.memory_space<vmem>>, vector<8x8xbf16>
    tpu.vector_store %arg6[%c0_14, %c0_15], %22 {strides = array<i32>} : memref<8x8xbf16, #tpu.memory_space<vmem>>, vector<8x8xbf16>,
    return
  }
  func.func @transform_0(%arg0: i32) -> (i32, i32) {
    %c0_i32 = arith.constant 0 : i32
    %c0_i32_0 = arith.constant 0 : i32
    return %arg0, %c0_i32 : i32, i32
  }
  func.func @transform_1(%arg0: i32) -> (i32, i32) {
    %c0_i32 = arith.constant 0 : i32
    %c0_i32_0 = arith.constant 0 : i32
    %c0_i32_1 = arith.constant 0 : i32
    return %c0_i32, %c0_i32_0 : i32, i32
  }
  func.func @transform_2(%arg0: i32) -> (i32, i32) {
    %c0_i32 = arith.constant 0 : i32
    %c0_i32_0 = arith.constant 0 : i32
    %c0_i32_1 = arith.constant 0 : i32
    return %c0_i32, %c0_i32_0 : i32, i32
  }
  func.func @transform_3(%arg0: i32) -> (i32, i32) {
    %c0_i32 = arith.constant 0 : i32
    %c0_i32_0 = arith.constant 0 : i32
    %c0_i32_1 = arith.constant 0 : i32
    return %c0_i32, %c0_i32_0 : i32, i32
  }
  func.func @transform_4(%arg0: i32) -> (i32, i32) {
    %c0_i32 = arith.constant 0 : i32
    %c0_i32_0 = arith.constant 0 : i32
    %c0_i32_1 = arith.constant 0 : i32
    return %c0_i32, %c0_i32_0 : i32, i32
  }
  func.func @transform_5(%arg0: i32) -> (i32, i32) {
    %c0_i32 = arith.constant 0 : i32
    %c0_i32_0 = arith.constant 0 : i32
    return %arg0, %c0_i32 : i32, i32
  }
}

</mosaic_0001>

<llo_original>
// kernel: tpu_custom_call.1
$region0: #{tpu_custom_call.1}
  #allocation0 [shape = 'u32[]', space=smem, size = 0x4, offset = 0x4, fixed_abs, tag = 'smem constant byte address 0x4 - core index']
  #allocation1 [shape = 'u32[144,128]{1,0:T(1,128)}', space=vmem, size = 0x12000, scoped, tag = 'internal scratch']
  %s0 = inlined_call_operand.vmem [shape: f32[8,32], index: 0, kind: input, shape index: {}]
  %s1 = inlined_call_operand.vmem [shape: bf16[32,64], index: 1, kind: input, shape index: {}]
  %s2 = inlined_call_operand.vmem [shape: f32[1,64], index: 2, kind: input, shape index: {}]
  %s3 = inlined_call_operand.vmem [shape: bf16[64,8], index: 3, kind: input, shape index: {}]
  %s4 = inlined_call_operand.vmem [shape: f32[1,8], index: 4, kind: input, shape index: {}]
  %s5 = inlined_call_operand.hbm [shape: bf16[8,8], index: 5, kind: output, shape index: {}]
  %s6 = sld [smem:[#allocation0]]
  $region30: #{tpu_custom_call.1} parent=0
    _
  %s8 = ssub.s32 1, %s6
  %s9 = scalar_select 0, %s8, %s6
  $region1: #{tpu_custom_call.1} parent=0
    #allocation2 [shape = 'u8[2048]{0}', space=vmem, size = 0x800, scoped, tag = 'output window, operand 0, single buffered']
    #allocation3 [shape = 's32[1]{0}', space=sflag, size = 0x4, scoped, tag = 'scoped memory for tpu_custom_call.1']
    %10 = vsyncpa [#allocation3], 0
    // Predicated region
    $region2: #{tpu_custom_call.1} parent=1 // pred_check
      _
    $region3: #{tpu_custom_call.1} parent=1 // pred_check_branch
      %12 = sbr.rel (0) target = $region5
    $region4: #{tpu_custom_call.1} parent=1 // pred_region
      _
    $region5: #{tpu_custom_call.1} parent=1 // pred_fallthru
      _
    // Predicated region
    $region6: #{tpu_custom_call.1} parent=1 // pred_check
      _
    $region7: #{tpu_custom_call.1} parent=1 // pred_check_branch
      %14 = sbr.rel (0) target = $region9
    $region8: #{tpu_custom_call.1} parent=1 // pred_region
      _
    $region9: #{tpu_custom_call.1} parent=1 // pred_fallthru
      _
    // Predicated region
    $region10: #{tpu_custom_call.1} parent=1 // pred_check
      _
    $region11: #{tpu_custom_call.1} parent=1 // pred_check_branch
      %16 = sbr.rel (0) target = $region13
    $region12: #{tpu_custom_call.1} parent=1 // pred_region
      _
    $region13: #{tpu_custom_call.1} parent=1 // pred_fallthru
      _
    // Predicated region
    $region14: #{tpu_custom_call.1} parent=1 // pred_check
      _
    $region15: #{tpu_custom_call.1} parent=1 // pred_check_branch
      %18 = sbr.rel (0) target = $region17
    $region16: #{tpu_custom_call.1} parent=1 // pred_region
      _
    $region17: #{tpu_custom_call.1} parent=1 // pred_fallthru
      _
    // Predicated region
    $region18: #{tpu_custom_call.1} parent=1 // pred_check
      _
    $region19: #{tpu_custom_call.1} parent=1 // pred_check_branch
      %20 = sbr.rel (0) target = $region21
    $region20: #{tpu_custom_call.1} parent=1 // pred_region
      _
    $region21: #{tpu_custom_call.1} parent=1 // pred_fallthru
      _
    %v22 = vld [vmem:[%s0] sm:$0xff]
    %v23 = vpack.c.bf16 %v22, %v22
    %v24 = vld [vmem:[%s1] sm:$0xf]
    %v25 = vld [vmem:[%s1 + $0x4] sm:$0xf]
    %v26 = vld [vmem:[%s1 + $0x8] sm:$0xf]
    %v27 = vld [vmem:[%s1 + $0xc] sm:$0xf]
    %v28 = vld [vmem:[%s2] sm:$0x1]
    %v30 = vlaneseq
    %v31 = vshrl.u32 %v30, 7
    %v32 = vsub.s32 0, %v31
    %v33 = vrot.slane %v28, %v32
    %v39 = vunpack.c.l.b16 %v24
    %v40 = vunpack.c.l.b16 %v25
    %v41 = vunpack.c.l.b16 %v26
    %v42 = vunpack.c.l.b16 %v27
    %v43 = vpack.c.b16 %v40, %v39
    %v44 = vpack.c.b16 %v42, %v41
    %vm47 = vcmask 261120
    %v49 = vsel %vm47, %v23, 0
    %51 = vmatprep.subr.bf16.mxu0 0
    %52 = vmatpush1.bf16.msra.mxu0 %v43
    %53 = vmatprep.subr.bf16.mxu0 0
    %54 = vmatpush1.bf16.msra.mxu0 %v44
    %55 = vmatprep.subr.bf16.mxu0 0
    %56 = vmatpush1.bf16.msra.mxu0 0
    %57 = vmatprep.subr.bf16.mxu0 0
    %58 = vmatpush1.bf16.msra.mxu0 0
    %59 = vmatprep.subr.bf16.mxu0 0
    %60 = vmatpush1.bf16.msra.mxu0 0
    %61 = vmatprep.subr.bf16.mxu0 0
    %62 = vmatpush1.bf16.msra.mxu0 0
    %63 = vmatprep.subr.bf16.mxu0 0
    %64 = vmatpush1.bf16.msra.mxu0 0
    %65 = vmatprep.subr.bf16.mxu0 0
    %66 = vmatpush1.bf16.msra.mxu0 0
    %67 = vmatprep.subr.bf16.mxu0 0
    %68 = vmatpush1.bf16.msra.mxu0 0
    %69 = vmatprep.subr.bf16.mxu0 0
    %70 = vmatpush1.bf16.msra.mxu0 0
    %71 = vmatprep.subr.bf16.mxu0 0
    %72 = vmatpush1.bf16.msra.mxu0 0
    %73 = vmatprep.subr.bf16.mxu0 0
    %74 = vmatpush1.bf16.msra.mxu0 0
    %75 = vmatprep.subr.bf16.mxu0 0
    %76 = vmatpush1.bf16.msra.mxu0 0
    %77 = vmatprep.subr.bf16.mxu0 0
    %78 = vmatpush1.bf16.msra.mxu0 0
    %79 = vmatprep.subr.bf16.mxu0 0
    %80 = vmatpush1.bf16.msra.mxu0 0
    %81 = vmatprep.subr.bf16.mxu0 0
    %82 = vmatpush1.bf16.msra.mxu0 0
    %83 = vmatprep.mubr.bf16.mxu0 0
    %84 = vmatmul.mubr.bf16.gmra.mrb[0].mxu0 %v49
    %v85 = vpop.f32.mrb[0].mxu0
    %v86 = vadd.f32 %v33, %v85
    %v87 = vpop.f32.mrb[0].mxu0
    %v88 = vpop.f32.mrb[0].mxu0
    %v89 = vpop.f32.mrb[0].mxu0
    %90 = vdwg.mxu0
    %v91 = vmax.f32 %v86, 0.0
    %v92 = vpack.c.bf16 %v91, %v91
    %v93 = vld [vmem:[%s3] sm:$0xf]
    %v94 = vld [vmem:[%s3 + $0x4] sm:$0xf]
    %v95 = vld [vmem:[%s3 + $0x8] sm:$0xf]
    %v96 = vld [vmem:[%s3 + $0xc] sm:$0xf]
    %v97 = vld [vmem:[%s3 + $0x10] sm:$0xf]
    %v98 = vld [vmem:[%s3 + $0x14] sm:$0xf]
    %v99 = vld [vmem:[%s3 + $0x18] sm:$0xf]
    %v100 = vld [vmem:[%s3 + $0x1c] sm:$0xf]
    %v101 = vld [vmem:[%s4] sm:$0x1]
    %v103 = vlaneseq
    %v104 = vshrl.u32 %v103, 7
    %v105 = vsub.s32 0, %v104
    %v106 = vrot.slane %v101, %v105
    %v116 = vunpack.c.l.b16 %v93
    %v117 = vunpack.c.l.b16 %v94
    %v118 = vunpack.c.l.b16 %v95
    %v119 = vunpack.c.l.b16 %v96
    %v120 = vunpack.c.l.b16 %v97
    %v121 = vunpack.c.l.b16 %v98
    %v122 = vunpack.c.l.b16 %v99
    %v123 = vunpack.c.l.b16 %v100
    %v124 = vpack.c.b16 %v117, %v116
    %v125 = vpack.c.b16 %v119, %v118
    %v126 = vpack.c.b16 %v121, %v120
    %v127 = vpack.c.b16 %v123, %v122
    %vm132 = vcmask 523264
    %v134 = vsel %vm132, %v92, 0
    %136 = vmatprep.subr.bf16.mxu0 0
    %137 = vmatpush1.bf16.msra.mxu0 %v124
    %138 = vmatprep.subr.bf16.mxu0 0
    %139 = vmatpush1.bf16.msra.mxu0 %v125
    %140 = vmatprep.subr.bf16.mxu0 0
    %141 = vmatpush1.bf16.msra.mxu0 %v126
    %142 = vmatprep.subr.bf16.mxu0 0
    %143 = vmatpush1.bf16.msra.mxu0 %v127
    %144 = vmatprep.subr.bf16.mxu0 0
    %145 = vmatpush1.bf16.msra.mxu0 0
    %146 = vmatprep.subr.bf16.mxu0 0
    %147 = vmatpush1.bf16.msra.mxu0 0
    %148 = vmatprep.subr.bf16.mxu0 0
    %149 = vmatpush1.bf16.msra.mxu0 0
    %150 = vmatprep.subr.bf16.mxu0 0
    %151 = vmatpush1.bf16.msra.mxu0 0
    %152 = vmatprep.subr.bf16.mxu0 0
    %153 = vmatpush1.bf16.msra.mxu0 0
    %154 = vmatprep.subr.bf16.mxu0 0
    %155 = vmatpush1.bf16.msra.mxu0 0
    %156 = vmatprep.subr.bf16.mxu0 0
    %157 = vmatpush1.bf16.msra.mxu0 0
    %158 = vmatprep.subr.bf16.mxu0 0
    %159 = vmatpush1.bf16.msra.mxu0 0
    %160 = vmatprep.subr.bf16.mxu0 0
    %161 = vmatpush1.bf16.msra.mxu0 0
    %162 = vmatprep.subr.bf16.mxu0 0
    %163 = vmatpush1.bf16.msra.mxu0 0
    %164 = vmatprep.subr.bf16.mxu0 0
    %165 = vmatpush1.bf16.msra.mxu0 0
    %166 = vmatprep.subr.bf16.mxu0 0
    %167 = vmatpush1.bf16.msra.mxu0 0
    %168 = vmatprep.mubr.bf16.mxu0 0
    %169 = vmatmul.mubr.bf16.gmra.mrb[0].mxu0 %v134
    %v170 = vpop.f32.mrb[0].mxu0
    %v171 = vadd.f32 %v106, %v170
    %v172 = vpop.f32.mrb[0].mxu0
    %v173 = vpop.f32.mrb[0].mxu0
    %v174 = vpop.f32.mrb[0].mxu0
    %175 = vdwg.mxu0
    %v176 = vmul.f32 %v171, 0.5
    %v177 = vtanh.pop %v176
    %v178 = vmul.f32 %v177, 0.5
    %v179 = vadd.f32 %v178, 0.5
    %v180 = vpack.c.bf16 %v179, %v179
    %vm181 = vcmask 60416
    %182 = vst.msk [vmem:[#allocation2] sm:$0xf] %vm181, %v180
    // Predicated region
    $region22: #{tpu_custom_call.1} parent=1 // pred_check
      _
    $region23: #{tpu_custom_call.1} parent=1 // pred_check_branch
      %184 = sbr.rel (0) target = $region25
    $region24: #{tpu_custom_call.1} parent=1 // pred_region
      %s186 = ssub.s32 64, 64
      %187 = vsyncadd [#allocation3], %s186
      %s189 = sshll.u32 [#allocation2], 4
      %s190 = int_to_ptr.vmem [resolvable:$true] %s189
      %192 = dma.vmem_to_hbm [thread:$0]  %s190, 64, %s5, [#allocation3]
    $region25: #{tpu_custom_call.1} parent=1 // pred_fallthru
      _
    // Predicated region
    $region26: #{tpu_custom_call.1} parent=1 // pred_check
      _
    $region27: #{tpu_custom_call.1} parent=1 // pred_check_branch
      %194 = sbr.rel (0) target = $region29
    $region28: #{tpu_custom_call.1} parent=1 // pred_region
      %195 = dma.done [#allocation3], 64
    $region29: #{tpu_custom_call.1} parent=1 // pred_fallthru
      _
    %196 = vsyncpa [#allocation3], 1

// kernel: tpu_custom_call.1
$region0: #{tpu_custom_call.1}
  #allocation0 [shape = 'u32[]', space=smem, size = 0x4, offset = 0x4, fixed_abs, tag = 'smem constant byte address 0x4 - core index']
  #allocation1 [shape = 'u32[144,128]{1,0:T(1,128)}', space=vmem, size = 0x12000, scoped, tag = 'internal scratch']
  %s0 = inlined_call_operand.vmem [shape: f32[8,32], index: 0, kind: input, shape index: {}]
  %s1 = inlined_call_operand.vmem [shape: bf16[32,64], index: 1, kind: input, shape index: {}]
  %s2 = inlined_call_operand.vmem [shape: f32[1,64], index: 2, kind: input, shape index: {}]
  %s3 = inlined_call_operand.vmem [shape: bf16[64,8], index: 3, kind: input, shape index: {}]
  %s4 = inlined_call_operand.vmem [shape: f32[1,8], index: 4, kind: input, shape index: {}]
  %s5 = inlined_call_operand.hbm [shape: bf16[8,8], index: 5, kind: output, shape index: {}]
  %s6 = sld [smem:[#allocation0]]
  $region30: #{tpu_custom_call.1} parent=0
    _
  %s8 = ssub.s32 1, %s6
  %s9 = scalar_select 0, %s8, %s6
  $region1: #{tpu_custom_call.1} parent=0
    #allocation2 [shape = 'u8[2048]{0}', space=vmem, size = 0x800, scoped, tag = 'output window, operand 0, single buffered']
    #allocation3 [shape = 's32[1]{0}', space=sflag, size = 0x4, scoped, tag = 'scoped memory for tpu_custom_call.1']
    %10 = vsyncpa [#allocation3], 0
    // Predicated region
    $region2: #{tpu_custom_call.1} parent=1 // pred_check
      _
    $region3: #{tpu_custom_call.1} parent=1 // pred_check_branch
      %12 = sbr.rel (0) target = $region5
    $region4: #{tpu_custom_call.1} parent=1 // pred_region
      _
    $region5: #{tpu_custom_call.1} parent=1 // pred_fallthru
      _
    // Predicated region
    $region6: #{tpu_custom_call.1} parent=1 // pred_check
      _
    $region7: #{tpu_custom_call.1} parent=1 // pred_check_branch
      %14 = sbr.rel (0) target = $region9
    $region8: #{tpu_custom_call.1} parent=1 // pred_region
      _
    $region9: #{tpu_custom_call.1} parent=1 // pred_fallthru
      _
    // Predicated region
    $region10: #{tpu_custom_call.1} parent=1 // pred_check
      _
    $region11: #{tpu_custom_call.1} parent=1 // pred_check_branch
      %16 = sbr.rel (0) target = $region13
    $region12: #{tpu_custom_call.1} parent=1 // pred_region
      _
    $region13: #{tpu_custom_call.1} parent=1 // pred_fallthru
      _
    // Predicated region
    $region14: #{tpu_custom_call.1} parent=1 // pred_check
      _
    $region15: #{tpu_custom_call.1} parent=1 // pred_check_branch
      %18 = sbr.rel (0) target = $region17
    $region16: #{tpu_custom_call.1} parent=1 // pred_region
      _
    $region17: #{tpu_custom_call.1} parent=1 // pred_fallthru
      _
    // Predicated region
    $region18: #{tpu_custom_call.1} parent=1 // pred_check
      _
    $region19: #{tpu_custom_call.1} parent=1 // pred_check_branch
      %20 = sbr.rel (0) target = $region21
    $region20: #{tpu_custom_call.1} parent=1 // pred_region
      _
    $region21: #{tpu_custom_call.1} parent=1 // pred_fallthru
      _
    %v22 = vld [vmem:[%s0] sm:$0xff]
    %v23 = vpack.c.bf16 %v22, %v22
    %v24 = vld [vmem:[%s1] sm:$0xf]
    %v25 = vld [vmem:[%s1 + $0x4] sm:$0xf]
    %v26 = vld [vmem:[%s1 + $0x8] sm:$0xf]
    %v27 = vld [vmem:[%s1 + $0xc] sm:$0xf]
    %v28 = vld [vmem:[%s2] sm:$0x1]
    %v30 = vlaneseq
    %v31 = vshrl.u32 %v30, 7
    %v32 = vsub.s32 0, %v31
    %v33 = vrot.slane %v28, %v32
    %v39 = vunpack.c.l.b16 %v24
    %v40 = vunpack.c.l.b16 %v25
    %v41 = vunpack.c.l.b16 %v26
    %v42 = vunpack.c.l.b16 %v27
    %v43 = vpack.c.b16 %v40, %v39
    %v44 = vpack.c.b16 %v42, %v41
    %vm47 = vcmask 261120
    %v49 = vsel %vm47, %v23, 0
    %51 = vmatprep.subr.bf16.mxu0 0
    %52 = vmatpush1.bf16.msra.mxu0 %v43
    %53 = vmatprep.subr.bf16.mxu0 0
    %54 = vmatpush1.bf16.msra.mxu0 %v44
    %55 = vmatprep.subr.bf16.mxu0 0
    %56 = vmatpush1.bf16.msra.mxu0 0
    %57 = vmatprep.subr.bf16.mxu0 0
    %58 = vmatpush1.bf16.msra.mxu0 0
    %59 = vmatprep.subr.bf16.mxu0 0
    %60 = vmatpush1.bf16.msra.mxu0 0
    %61 = vmatprep.subr.bf16.mxu0 0
    %62 = vmatpush1.bf16.msra.mxu0 0
    %63 = vmatprep.subr.bf16.mxu0 0
    %64 = vmatpush1.bf16.msra.mxu0 0
    %65 = vmatprep.subr.bf16.mxu0 0
    %66 = vmatpush1.bf16.msra.mxu0 0
    %67 = vmatprep.subr.bf16.mxu0 0
    %68 = vmatpush1.bf16.msra.mxu0 0
    %69 = vmatprep.subr.bf16.mxu0 0
    %70 = vmatpush1.bf16.msra.mxu0 0
    %71 = vmatprep.subr.bf16.mxu0 0
    %72 = vmatpush1.bf16.msra.mxu0 0
    %73 = vmatprep.subr.bf16.mxu0 0
    %74 = vmatpush1.bf16.msra.mxu0 0
    %75 = vmatprep.subr.bf16.mxu0 0
    %76 = vmatpush1.bf16.msra.mxu0 0
    %77 = vmatprep.subr.bf16.mxu0 0
    %78 = vmatpush1.bf16.msra.mxu0 0
    %79 = vmatprep.subr.bf16.mxu0 0
    %80 = vmatpush1.bf16.msra.mxu0 0
    %81 = vmatprep.subr.bf16.mxu0 0
    %82 = vmatpush1.bf16.msra.mxu0 0
    %83 = vmatprep.mubr.bf16.mxu0 0
    %84 = vmatmul.mubr.bf16.gmra.mrb[0].mxu0 %v49
    %v85 = vpop.f32.mrb[0].mxu0
    %v86 = vadd.f32 %v33, %v85
    %v87 = vpop.f32.mrb[0].mxu0
    %v88 = vpop.f32.mrb[0].mxu0
    %v89 = vpop.f32.mrb[0].mxu0
    %90 = vdwg.mxu0
    %v91 = vmax.f32 %v86, 0.0
    %v92 = vpack.c.bf16 %v91, %v91
    %v93 = vld [vmem:[%s3] sm:$0xf]
    %v94 = vld [vmem:[%s3 + $0x4] sm:$0xf]
    %v95 = vld [vmem:[%s3 + $0x8] sm:$0xf]
    %v96 = vld [vmem:[%s3 + $0xc] sm:$0xf]
    %v97 = vld [vmem:[%s3 + $0x10] sm:$0xf]
    %v98 = vld [vmem:[%s3 + $0x14] sm:$0xf]
    %v99 = vld [vmem:[%s3 + $0x18] sm:$0xf]
    %v100 = vld [vmem:[%s3 + $0x1c] sm:$0xf]
    %v101 = vld [vmem:[%s4] sm:$0x1]
    %v103 = vlaneseq
    %v104 = vshrl.u32 %v103, 7
    %v105 = vsub.s32 0, %v104
    %v106 = vrot.slane %v101, %v105
    %v116 = vunpack.c.l.b16 %v93
    %v117 = vunpack.c.l.b16 %v94
    %v118 = vunpack.c.l.b16 %v95
    %v119 = vunpack.c.l.b16 %v96
    %v120 = vunpack.c.l.b16 %v97
    %v121 = vunpack.c.l.b16 %v98
    %v122 = vunpack.c.l.b16 %v99
    %v123 = vunpack.c.l.b16 %v100
    %v124 = vpack.c.b16 %v117, %v116
    %v125 = vpack.c.b16 %v119, %v118
    %v126 = vpack.c.b16 %v121, %v120
    %v127 = vpack.c.b16 %v123, %v122
    %vm132 = vcmask 523264
    %v134 = vsel %vm132, %v92, 0
    %136 = vmatprep.subr.bf16.mxu0 0
    %137 = vmatpush1.bf16.msra.mxu0 %v124
    %138 = vmatprep.subr.bf16.mxu0 0
    %139 = vmatpush1.bf16.msra.mxu0 %v125
    %140 = vmatprep.subr.bf16.mxu0 0
    %141 = vmatpush1.bf16.msra.mxu0 %v126
    %142 = vmatprep.subr.bf16.mxu0 0
    %143 = vmatpush1.bf16.msra.mxu0 %v127
    %144 = vmatprep.subr.bf16.mxu0 0
    %145 = vmatpush1.bf16.msra.mxu0 0
    %146 = vmatprep.subr.bf16.mxu0 0
    %147 = vmatpush1.bf16.msra.mxu0 0
    %148 = vmatprep.subr.bf16.mxu0 0
    %149 = vmatpush1.bf16.msra.mxu0 0
    %150 = vmatprep.subr.bf16.mxu0 0
    %151 = vmatpush1.bf16.msra.mxu0 0
    %152 = vmatprep.subr.bf16.mxu0 0
    %153 = vmatpush1.bf16.msra.mxu0 0
    %154 = vmatprep.subr.bf16.mxu0 0
    %155 = vmatpush1.bf16.msra.mxu0 0
    %156 = vmatprep.subr.bf16.mxu0 0
    %157 = vmatpush1.bf16.msra.mxu0 0
    %158 = vmatprep.subr.bf16.mxu0 0
    %159 = vmatpush1.bf16.msra.mxu0 0
    %160 = vmatprep.subr.bf16.mxu0 0
    %161 = vmatpush1.bf16.msra.mxu0 0
    %162 = vmatprep.subr.bf16.mxu0 0
    %163 = vmatpush1.bf16.msra.mxu0 0
    %164 = vmatprep.subr.bf16.mxu0 0
    %165 = vmatpush1.bf16.msra.mxu0 0
    %166 = vmatprep.subr.bf16.mxu0 0
    %167 = vmatpush1.bf16.msra.mxu0 0
    %168 = vmatprep.mubr.bf16.mxu0 0
    %169 = vmatmul.mubr.bf16.gmra.mrb[0].mxu0 %v134
    %v170 = vpop.f32.mrb[0].mxu0
    %v171 = vadd.f32 %v106, %v170
    %v172 = vpop.f32.mrb[0].mxu0
    %v173 = vpop.f32.mrb[0].mxu0
    %v174 = vpop.f32.mrb[0].mxu0
    %175 = vdwg.mxu0
    %v176 = vmul.f32 %v171, 0.5
    %v177 = vtanh.pop %v176
    %v178 = vmul.f32 %v177, 0.5
    %v179 = vadd.f32 %v178, 0.5
    %v180 = vpack.c.bf16 %v179, %v179
    %vm181 = vcmask 60416
    %182 = vst.msk [vmem:[#allocation2] sm:$0xf] %vm181, %v180
    // Predicated region
    $region22: #{tpu_custom_call.1} parent=1 // pred_check
      _
    $region23: #{tpu_custom_call.1} parent=1 // pred_check_branch
      %184 = sbr.rel (0) target = $region25
    $region24: #{tpu_custom_call.1} parent=1 // pred_region
      %s186 = ssub.s32 64, 64
      %187 = vsyncadd [#allocation3], %s186
      %s189 = sshll.u32 [#allocation2], 4
      %s190 = int_to_ptr.vmem [resolvable:$true] %s189
      %192 = dma.vmem_to_hbm [thread:$0]  %s190, 64, %s5, [#allocation3]
    $region25: #{tpu_custom_call.1} parent=1 // pred_fallthru
      _
    // Predicated region
    $region26: #{tpu_custom_call.1} parent=1 // pred_check
      _
    $region27: #{tpu_custom_call.1} parent=1 // pred_check_branch
      %194 = sbr.rel (0) target = $region29
    $region28: #{tpu_custom_call.1} parent=1 // pred_region
      %195 = dma.done [#allocation3], 64
    $region29: #{tpu_custom_call.1} parent=1 // pred_fallthru
      _
    %196 = vsyncpa [#allocation3], 1

</llo_original>
